<compile_context>
chip_gen: v5e
topology: v5e:2x2
jax: 0.10.0
libtpu: 0.0.40
codegen_flags: <defaults>
</compile_context>

<pallas_src>
import math

import jax
import jax.numpy as jnp
from jax import lax
from jax.experimental import pallas as pl
from jax.experimental.pallas import tpu as pltpu


# ---------------------------------------------------------------------------
# Kernels
# ---------------------------------------------------------------------------

def _proj_resident_kernel(x_ref, w_ref, b_ref, o_ref):
    """Weight-resident path.

    x_ref: [tm, Kp] (matmul dtype), w_ref: [Kp, Np] (matmul dtype),
    b_ref: [1, Np] f32, o_ref: [tm, Np] (output dtype).
    Whole weight/bias live in VMEM; grid is a 1-D stream over rows of x.
    """
    y = jnp.dot(x_ref[...], w_ref[...], preferred_element_type=jnp.float32)
    o_ref[...] = jnp.tanh(y + b_ref[...]).astype(o_ref.dtype)


def _proj_tiled_kernel_f32out(x_ref, w_ref, b_ref, o_ref):
    """Tiled (i, j, k) path, f32 output: accumulate directly into o_ref."""
    k = pl.program_id(2)

    @pl.when(k == 0)
    def _():
        o_ref[...] = jnp.zeros_like(o_ref)

    o_ref[...] += jnp.dot(x_ref[...], w_ref[...],
                          preferred_element_type=jnp.float32)

    @pl.when(k == pl.num_programs(2) - 1)
    def _():
        o_ref[...] = jnp.tanh(o_ref[...] + b_ref[...])


def _proj_tiled_kernel_acc(x_ref, w_ref, b_ref, o_ref, acc_ref):
    """Tiled (i, j, k) path, non-f32 output: f32 VMEM scratch accumulator."""
    k = pl.program_id(2)

    @pl.when(k == 0)
    def _():
        acc_ref[...] = jnp.zeros_like(acc_ref)

    acc_ref[...] += jnp.dot(x_ref[...], w_ref[...],
                            preferred_element_type=jnp.float32)

    @pl.when(k == pl.num_programs(2) - 1)
    def _():
        o_ref[...] = jnp.tanh(acc_ref[...] + b_ref[...]).astype(o_ref.dtype)


# ---------------------------------------------------------------------------
# Wrapper
# ---------------------------------------------------------------------------

def _round_up(a, b):
    return ((a + b - 1) // b) * b


def _split_tile(dim, max_tile, granule):
    """Return (tile, padded_dim) with tile a multiple of `granule`,
    tile <= ~max_tile, and padded_dim an exact multiple of tile covering dim."""
    padded = _round_up(dim, granule)
    if padded <= max_tile:
        return padded, padded
    n = -(-padded // max_tile)                 # cdiv
    tile = _round_up(-(-padded // n), granule)
    return tile, tile * n


_VMEM_LIMIT = 48 * 1024 * 1024            # safe on v7x (64 MiB/TC), fine v5e/v6e
_RESIDENT_PATH_BUDGET = 36 * 1024 * 1024  # VMEM the weight-resident path may use


def projection_forward(x, weight, bias, *, matmul_dtype=jnp.bfloat16,
                       force_tiled=False):
    """y = tanh(x @ weight.T + bias)   (PyTorch nn.Linear weight layout).

    x: (..., K) float; weight: (N, K); bias: (N,).
    matmul_dtype: dtype for the MXU operands (None keeps x.dtype).
    Accumulation, bias-add and tanh are always performed in f32.
    """
    orig_shape = x.shape
    K = orig_shape[-1]
    N, Kw = weight.shape
    assert Kw == K, (weight.shape, K)

    out_dtype = x.dtype
    op_dtype = jnp.dtype(out_dtype if matmul_dtype is None else matmul_dtype)
    op_bytes = op_dtype.itemsize
    out_bytes = jnp.dtype(out_dtype).itemsize

    M = math.prod(orig_shape[:-1]) if len(orig_shape) > 1 else 1
    x2d = x.reshape(M, K)

    # M is never padded: either one full-extent block (always a legal block
    # shape) or 512-row blocks (a multiple of the 8/16/32 sublane granule for
    # every operand dtype); Pallas masks the partial last block.
    tm = M if M <= 512 else 512
    gm = -(-M // tm)                           # cdiv

    # Choose between the weight-resident fast path and the general tiled path.
    Kp_full = _round_up(K, 128)
    Np_full = _round_up(N, 128)
    resident_bytes = (2 * Kp_full * Np_full * op_bytes     # weight buffers
                      + 2 * tm * Kp_full * op_bytes        # x tiles (dbl buf)
                      + 2 * tm * Np_full * out_bytes       # out tiles
                      + 2 * Np_full * 4)                   # bias
    use_resident = (not force_tiled) and resident_bytes <= _RESIDENT_PATH_BUDGET

    if use_resident:
        tk, Kp = Kp_full, Kp_full
        tn, Np = Np_full, Np_full
    else:
        tn, Np = _split_tile(N, 512, 128)
        tk, Kp = _split_tile(K, 2048, 128)

    # Pad only K (zero contribution to the reduction) and N (weight / bias
    # columns -> lane-dense output).  No M padding, no M slice-back.
    xw = x2d.astype(op_dtype)
    if Kp != K:
        xw = jnp.pad(xw, ((0, 0), (0, Kp - K)))

    wT = weight.T.astype(op_dtype)             # one-time (K, N) transpose
    if (Kp, Np) != (K, N):
        wT = jnp.pad(wT, ((0, Kp - K), (0, Np - N)))

    b2d = bias.astype(jnp.float32).reshape(1, N)
    if Np != N:
        b2d = jnp.pad(b2d, ((0, 0), (0, Np - N)))

    out_shape = jax.ShapeDtypeStruct((M, Np), out_dtype)

    if use_resident:
        grid_spec = pltpu.PrefetchScalarGridSpec(
            num_scalar_prefetch=0,
            grid=(gm,),
            in_specs=[
                pl.BlockSpec((tm, Kp), lambda i: (i, 0)),   # x row stream
                pl.BlockSpec((Kp, Np), lambda i: (0, 0)),   # resident weight
                pl.BlockSpec((1, Np), lambda i: (0, 0)),    # resident bias
            ],
            out_specs=pl.BlockSpec((tm, Np), lambda i: (i, 0)),
        )
        kernel = _proj_resident_kernel
        dim_sem = ("parallel",)
        bytes_accessed = (xw.size * op_bytes + wT.size * op_bytes
                          + b2d.size * 4 + M * Np * out_bytes)
    else:
        gn, gk = Np // tn, Kp // tk
        if out_dtype == jnp.float32:
            kernel = _proj_tiled_kernel_f32out
            scratch = []
        else:
            kernel = _proj_tiled_kernel_acc
            scratch = [pltpu.VMEM((tm, tn), jnp.float32)]
        grid_spec = pltpu.PrefetchScalarGridSpec(
            num_scalar_prefetch=0,
            grid=(gm, gn, gk),
            in_specs=[
                pl.BlockSpec((tm, tk), lambda i, j, k: (i, k)),   # x tile
                pl.BlockSpec((tk, tn), lambda i, j, k: (k, j)),   # W^T tile
                pl.BlockSpec((1, tn), lambda i, j, k: (0, j)),    # bias tile
            ],
            out_specs=pl.BlockSpec((tm, tn), lambda i, j, k: (i, j)),
            scratch_shapes=scratch,
        )
        dim_sem = ("parallel", "parallel", "arbitrary")
        # Actual re-read factors under the (i, j, k) grid order.
        bytes_accessed = (xw.size * op_bytes * gn
                          + wT.size * op_bytes * gm
                          + b2d.size * 4 * gm
                          + M * Np * out_bytes)

    cost = pl.CostEstimate(
        flops=2 * M * Kp * Np,
        transcendentals=M * Np,                 # tanh
        bytes_accessed=int(bytes_accessed),
    )

    out = pl.pallas_call(
        kernel,
        out_shape=out_shape,
        grid_spec=grid_spec,
        compiler_params=pltpu.CompilerParams(
            dimension_semantics=dim_sem,
            vmem_limit_bytes=_VMEM_LIMIT,
        ),
        cost_estimate=cost,
    )(xw, wT, b2d)

    if Np != N:
        out = out[:, :N]
    return out.reshape(*orig_shape[:-1], N)


# ---------------------------------------------------------------------------
# Self-test
# ---------------------------------------------------------------------------

if __name__ == "__main__":
    # Shapes consistent with the module's forward:
    #   x: (batch, seq, input_hidden) -> Linear over last dim -> (batch, seq, hidden)
    batch, seq = 2, 8
    input_hidden_size = 64
    hidden_size = 32

    key = jax.random.PRNGKey(0)
    kx, kw, kb = jax.random.split(key, 3)

    x = jax.random.normal(kx, (batch, seq, input_hidden_size), dtype=jnp.float32)
    # Deterministic init mimicking nn.Linear's uniform(-1/sqrt(K), 1/sqrt(K)).
    bound = 1.0 / (input_hidden_size ** 0.5)
    weight = jax.random.uniform(kw, (hidden_size, input_hidden_size),
                                minval=-bound, maxval=bound, dtype=jnp.float32)
    bias = jax.random.uniform(kb, (hidden_size,), minval=-bound, maxval=bound,
                              dtype=jnp.float32)

    def reference(xr, wr, br):
        y = lax.dot_general(xr, wr,
                            dimension_numbers=(((xr.ndim - 1,), (1,)), ((), ())),
                            precision=lax.Precision.HIGHEST)
        return jnp.tanh(y + br)

    ref = reference(x, weight, bias)

    # 1) Default path: bf16 MXU operands, weight-resident 1-D grid.
    out = jax.block_until_ready(projection_forward(x, weight, bias))
    assert out.shape == (batch, seq, hidden_size)
    assert jnp.allclose(out, ref, atol=2e-2), \
        float(jnp.max(jnp.abs(out - ref)))

    # 2) Full-f32 operands: tight agreement with the reference.
    out_f32 = jax.block_until_ready(
        projection_forward(x, weight, bias, matmul_dtype=None))
    assert jnp.allclose(out_f32, ref, atol=1e-4), \
        float(jnp.max(jnp.abs(out_f32 - ref)))

    # 3) Larger shape, forced onto the general tiled (M, N, K) grid path
    #    (exercises partial-M masking, f32 in-place output accumulation).
    xb = jax.random.normal(kx, (4, 160, 384), dtype=jnp.float32)
    wb = jax.random.uniform(kw, (320, 384), minval=-0.05, maxval=0.05,
                            dtype=jnp.float32)
    bb = jax.random.uniform(kb, (320,), minval=-0.05, maxval=0.05,
                            dtype=jnp.float32)
    outb = jax.block_until_ready(
        projection_forward(xb, wb, bb, matmul_dtype=None, force_tiled=True))
    refb = reference(xb, wb, bb)
    assert outb.shape == (4, 160, 320)
    assert jnp.allclose(outb, refb, atol=1e-4), \
        float(jnp.max(jnp.abs(outb - refb)))

    print("KERNEL_OK")
</pallas_src>

<mosaic_0001>
module attributes {stable_mosaic.version = 11 : i64} {
  func.func @_proj_resident_kernel(%arg0: i32, %arg1: memref<16x128xbf16, #tpu.memory_space<vmem>>, %arg2: memref<128x128xbf16, #tpu.memory_space<vmem>>, %arg3: memref<1x128xf32, #tpu.memory_space<vmem>>, %arg4: memref<16x128xf32, #tpu.memory_space<vmem>>) attributes {dimension_semantics = [#tpu.dimension_semantics<parallel>], iteration_bounds = array<i64: 1>, scalar_prefetch = 0 : i64, scratch_operands = 0 : i64, tpu.core_type = #tpu.core_type<tc>, window_params = [{transform_indices = @transform_0, window_bounds = array<i64: 16, 128>}, {pipeline_mode = #tpu.pipeline_mode<synchronous>, transform_indices = @transform_1, window_bounds = array<i64: 128, 128>}, {pipeline_mode = #tpu.pipeline_mode<synchronous>, transform_indices = @transform_2, window_bounds = array<i64: 1, 128>}, {transform_indices = @transform_3, window_bounds = array<i64: 16, 128>}]} {
    %c0 = arith.constant 0 : index
    %c0_0 = arith.constant 0 : index
    %0 = vector.load %arg1[%c0, %c0_0] : memref<16x128xbf16, #tpu.memory_space<vmem>>, vector<16x128xbf16>
    %c0_1 = arith.constant 0 : index
    %c0_2 = arith.constant 0 : index
    %1 = vector.load %arg2[%c0_1, %c0_2] : memref<128x128xbf16, #tpu.memory_space<vmem>>, vector<128x128xbf16>
    %cst = arith.constant dense<0.000000e+00> : vector<16x128xf32>
    %2 = tpu.matmul %0, %1, %cst {dimension_numbers = #tpu.dot_dimension_numbers<[1], [0], [0], [1], [0, 0, 1, 1], [], []>} : vector<16x128xbf16>, vector<128x128xbf16>, vector<16x128xf32> -> vector<16x128xf32>
    %c0_3 = arith.constant 0 : index
    %c0_4 = arith.constant 0 : index
    %3 = vector.load %arg3[%c0_3, %c0_4] : memref<1x128xf32, #tpu.memory_space<vmem>>, vector<1x128xf32>
    %4 = vector.broadcast %3 : vector<1x128xf32> to vector<16x128xf32>
    %5 = arith.addf %2, %4 : vector<16x128xf32>
    %6 = math.tanh %5 : vector<16x128xf32>
    %c0_5 = arith.constant 0 : index
    %c0_6 = arith.constant 0 : index
    %7 = vector.load %arg4[%c0_5, %c0_6] : memref<16x128xf32, #tpu.memory_space<vmem>>, vector<16x128xf32>
    tpu.vector_store %arg4[%c0_5, %c0_6], %6 {strides = array<i32>} : memref<16x128xf32, #tpu.memory_space<vmem>>, vector<16x128xf32>,
    return
  }
  func.func @transform_0(%arg0: i32) -> (i32, i32) {
    %c0_i32 = arith.constant 0 : i32
    %c0_i32_0 = arith.constant 0 : i32
    return %arg0, %c0_i32 : i32, i32
  }
  func.func @transform_1(%arg0: i32) -> (i32, i32) {
    %c0_i32 = arith.constant 0 : i32
    %c0_i32_0 = arith.constant 0 : i32
    %c0_i32_1 = arith.constant 0 : i32
    return %c0_i32, %c0_i32_0 : i32, i32
  }
  func.func @transform_2(%arg0: i32) -> (i32, i32) {
    %c0_i32 = arith.constant 0 : i32
    %c0_i32_0 = arith.constant 0 : i32
    %c0_i32_1 = arith.constant 0 : i32
    return %c0_i32, %c0_i32_0 : i32, i32
  }
  func.func @transform_3(%arg0: i32) -> (i32, i32) {
    %c0_i32 = arith.constant 0 : i32
    %c0_i32_0 = arith.constant 0 : i32
    return %arg0, %c0_i32 : i32, i32
  }
}

</mosaic_0001>

<llo_original>
// kernel: tpu_custom_call.1
$region0: #{tpu_custom_call.1}
  #allocation0 [shape = 'u32[]', space=smem, size = 0x4, offset = 0x4, fixed_abs, tag = 'smem constant byte address 0x4 - core index']
  #allocation1 [shape = 'u32[72,128]{1,0:T(1,128)}', space=vmem, size = 0x9000, scoped, tag = 'internal scratch']
  %s0 = inlined_call_operand.hbm [shape: bf16[16,128], index: 0, kind: input, shape index: {}]
  %s1 = inlined_call_operand.hbm [shape: bf16[128,128], index: 1, kind: input, shape index: {}]
  %s2 = inlined_call_operand.vmem [shape: f32[1,128], index: 2, kind: input, shape index: {}]
  %s3 = inlined_call_operand.hbm [shape: f32[16,128], index: 3, kind: output, shape index: {}]
  %s4 = sld [smem:[#allocation0]]
  $region30: #{tpu_custom_call.1} parent=0
    _
  %s6 = ssub.s32 1, %s4
  %s7 = scalar_select 0, %s6, %s4
  $region1: #{tpu_custom_call.1} parent=0
    #allocation2 [shape = 'u8[4096]{0}', space=vmem, size = 0x1000, scoped, tag = 'input window, operand 0, single buffered']
    #allocation3 [shape = 's32[1]{0}', space=sflag, size = 0x4, scoped, tag = 'scoped memory for tpu_custom_call.1']
    #allocation4 [shape = 's32[1]{0}', space=sflag, size = 0x4, scoped, tag = 'scoped memory for tpu_custom_call.1']
    #allocation5 [shape = 'u8[32768]{0}', space=vmem, size = 0x8000, scoped, tag = 'input window, operand 1, single buffered']
    #allocation6 [shape = 's32[1]{0}', space=sflag, size = 0x4, scoped, tag = 'scoped memory for tpu_custom_call.1']
    #allocation7 [shape = 'u8[8192]{0}', space=vmem, size = 0x2000, scoped, tag = 'output window, operand 0, single buffered']
    %8 = vsyncpa [#allocation3], 0
    %9 = vsyncpa [#allocation6], 0
    %10 = vsyncpa [#allocation4], 0
    // Predicated region
    $region2: #{tpu_custom_call.1} parent=1 // pred_check
      _
    $region3: #{tpu_custom_call.1} parent=1 // pred_check_branch
      %12 = sbr.rel (0) target = $region5
    $region4: #{tpu_custom_call.1} parent=1 // pred_region
      %14 = vsyncadd [#allocation3], 0
      %s15 = sshll.u32 %s0, 4
      %s16 = int_to_ptr.hbm [resolvable:$true] %s15
      %s17 = sshll.u32 [#allocation2], 4
      %s18 = int_to_ptr.vmem [resolvable:$true] %s17
      %23 = dma.hbm_to_vmem [thread:$0]  %s16, 128, %s18, [#allocation3], 64, 64, 4
    $region5: #{tpu_custom_call.1} parent=1 // pred_fallthru
      _
    // Predicated region
    $region6: #{tpu_custom_call.1} parent=1 // pred_check
      _
    $region7: #{tpu_custom_call.1} parent=1 // pred_check_branch
      %25 = sbr.rel (0) target = $region9
    $region8: #{tpu_custom_call.1} parent=1 // pred_region
      %27 = vsyncadd [#allocation6], 0
      %s28 = sshll.u32 %s1, 4
      %s29 = int_to_ptr.hbm [resolvable:$true] %s28
      %s30 = sshll.u32 [#allocation5], 4
      %s31 = int_to_ptr.vmem [resolvable:$true] %s30
      %36 = dma.hbm_to_vmem [thread:$0]  %s29, 1024, %s31, [#allocation6], 64, 64, 4
    $region9: #{tpu_custom_call.1} parent=1 // pred_fallthru
      _
    // Predicated region
    $region10: #{tpu_custom_call.1} parent=1 // pred_check
      _
    $region11: #{tpu_custom_call.1} parent=1 // pred_check_branch
      %38 = sbr.rel (0) target = $region13
    $region12: #{tpu_custom_call.1} parent=1 // pred_region
      _
    $region13: #{tpu_custom_call.1} parent=1 // pred_fallthru
      _
    // Predicated region
    $region14: #{tpu_custom_call.1} parent=1 // pred_check
      _
    $region15: #{tpu_custom_call.1} parent=1 // pred_check_branch
      %40 = sbr.rel (0) target = $region17
    $region16: #{tpu_custom_call.1} parent=1 // pred_region
      %42 = dma.done [#allocation3], 128
    $region17: #{tpu_custom_call.1} parent=1 // pred_fallthru
      _
    // Predicated region
    $region18: #{tpu_custom_call.1} parent=1 // pred_check
      _
    $region19: #{tpu_custom_call.1} parent=1 // pred_check_branch
      %44 = sbr.rel (0) target = $region21
    $region20: #{tpu_custom_call.1} parent=1 // pred_region
      %46 = dma.done [#allocation6], 1024
    $region21: #{tpu_custom_call.1} parent=1 // pred_fallthru
      _
    %v47 = vld [vmem:[#allocation2] sm:$0xf]
    %v48 = vld [vmem:[#allocation2 + $0x4] sm:$0xf]
    %v49 = vld [vmem:[#allocation5] sm:$0xf]
    %v50 = vld [vmem:[#allocation5 + $0x4] sm:$0xf]
    %v51 = vld [vmem:[#allocation5 + $0x8] sm:$0xf]
    %v52 = vld [vmem:[#allocation5 + $0xc] sm:$0xf]
    %v53 = vld [vmem:[#allocation5 + $0x10] sm:$0xf]
    %v54 = vld [vmem:[#allocation5 + $0x14] sm:$0xf]
    %v55 = vld [vmem:[#allocation5 + $0x18] sm:$0xf]
    %v56 = vld [vmem:[#allocation5 + $0x1c] sm:$0xf]
    %v57 = vld [vmem:[#allocation5 + $0x20] sm:$0xf]
    %v58 = vld [vmem:[#allocation5 + $0x24] sm:$0xf]
    %v59 = vld [vmem:[#allocation5 + $0x28] sm:$0xf]
    %v60 = vld [vmem:[#allocation5 + $0x2c] sm:$0xf]
    %v61 = vld [vmem:[#allocation5 + $0x30] sm:$0xf]
    %v62 = vld [vmem:[#allocation5 + $0x34] sm:$0xf]
    %v63 = vld [vmem:[#allocation5 + $0x38] sm:$0xf]
    %v64 = vld [vmem:[#allocation5 + $0x3c] sm:$0xf]
    %v65 = vld [vmem:[%s2] sm:$0x1]
    %v67 = vperm.slane %v65, 0
    %v71 = vunpack.c.l.b16 %v47
    %v72 = vunpack.c.l.b16 %v48
    %v73 = vpack.c.b16 %v72, %v71
    %v91 = vunpack.c.l.b16 %v49
    %v92 = vunpack.c.l.b16 %v50
    %v93 = vunpack.c.l.b16 %v51
    %v94 = vunpack.c.l.b16 %v52
    %v95 = vunpack.c.l.b16 %v53
    %v96 = vunpack.c.l.b16 %v54
    %v97 = vunpack.c.l.b16 %v55
    %v98 = vunpack.c.l.b16 %v56
    %v99 = vunpack.c.l.b16 %v57
    %v100 = vunpack.c.l.b16 %v58
    %v101 = vunpack.c.l.b16 %v59
    %v102 = vunpack.c.l.b16 %v60
    %v103 = vunpack.c.l.b16 %v61
    %v104 = vunpack.c.l.b16 %v62
    %v105 = vunpack.c.l.b16 %v63
    %v106 = vunpack.c.l.b16 %v64
    %v107 = vpack.c.b16 %v92, %v91
    %v108 = vpack.c.b16 %v94, %v93
    %v109 = vpack.c.b16 %v96, %v95
    %v110 = vpack.c.b16 %v98, %v97
    %v111 = vpack.c.b16 %v100, %v99
    %v112 = vpack.c.b16 %v102, %v101
    %v113 = vpack.c.b16 %v104, %v103
    %v114 = vpack.c.b16 %v106, %v105
    %123 = vmatpush.bf16.msra.mxu0 %v114
    %124 = vmatpush.bf16.msra.mxu0 %v113
    %125 = vmatpush.bf16.msra.mxu0 %v112
    %126 = vmatpush.bf16.msra.mxu0 %v111
    %127 = vmatpush.bf16.msra.mxu0 %v110
    %128 = vmatpush.bf16.msra.mxu0 %v109
    %129 = vmatpush.bf16.msra.mxu0 %v108
    %130 = vmatpush.bf16.msra.mxu0 %v107
    %131 = vmatmul.bf16.gmra.mxu0 %v73
    %v132 = vpop.f32.mrf.mxu0
    %v133 = vadd.f32 %v67, %v132
    %v134 = vpop.f32.mrf.mxu0
    %v135 = vadd.f32 %v67, %v134
    %136 = vdwg.mxu0
    %v137 = vtanh.pop %v133
    %v138 = vtanh.pop %v135
    %139 = vst [vmem:[#allocation7] sm:$0xff] %v137
    %140 = vst [vmem:[#allocation7 + $0x8] sm:$0xff] %v138
    // Predicated region
    $region22: #{tpu_custom_call.1} parent=1 // pred_check
      _
    $region23: #{tpu_custom_call.1} parent=1 // pred_check_branch
      %142 = sbr.rel (0) target = $region25
    $region24: #{tpu_custom_call.1} parent=1 // pred_region
      %144 = vsyncadd [#allocation4], 0
      %s145 = sshll.u32 [#allocation7], 4
      %s146 = int_to_ptr.vmem [resolvable:$true] %s145
      %s147 = sshll.u32 %s3, 4
      %s148 = int_to_ptr.hbm [resolvable:$true] %s147
      %153 = dma.vmem_to_hbm [thread:$0]  %s146, 256, %s148, [#allocation4], 128, 128, 8
    $region25: #{tpu_custom_call.1} parent=1 // pred_fallthru
      _
    // Predicated region
    $region26: #{tpu_custom_call.1} parent=1 // pred_check
      _
    $region27: #{tpu_custom_call.1} parent=1 // pred_check_branch
      %155 = sbr.rel (0) target = $region29
    $region28: #{tpu_custom_call.1} parent=1 // pred_region
      %157 = dma.done [#allocation4], 256
    $region29: #{tpu_custom_call.1} parent=1 // pred_fallthru
      _
    %158 = vsyncpa [#allocation3], 1
    %159 = vsyncpa [#allocation6], 1
    %160 = vsyncpa [#allocation4], 1

</llo_original>
